<compile_context>
chip_gen: v6e
topology: v6e:2x2x1
jax: 0.10.0
libtpu: 0.0.40
codegen_flags: <defaults>
</compile_context>

<pallas_src>
import jax
import jax.numpy as jnp
from jax.experimental import pallas as pl
from jax.experimental.pallas import tpu as pltpu


def _round_up(x: int, m: int) -> int:
    return (x + m - 1) // m * m


_N_HIDDEN = 10

# Packed-parameter layout (SMEM f32[43]):
#   [0:10]  fc1.weight[:, 0]                  (w1j0)
#   [10:20] fc1.weight[:, 1]                  (w1j1)
#   [20:30] fc1.bias                          (b1j)
#   [30:40] 0.99 * fc4.weight[0, :]           (w2j' -> relu branch)
#   [40]    0.01 * sum_j w2j*w1j0             (c0'  -> folded linear branch)
#   [41]    0.01 * sum_j w2j*w1j1             (c1')
#   [42]    0.01 * sum_j w2j*b1j + fc4.bias   (cb')


def _fit_kernel(params_ref, z_ref, out_ref):
    # y = cb' + c0'*z0 + c1'*z1 + sum_j w2j' * relu(w1j0*z0 + w1j1*z1 + b1j)
    #
    # params_ref: SMEM f32[43] (scalars; expected to lower to sreg-operand
    #             VALU ops / hoisted splats, not per-chunk broadcasts).
    # z_ref:      VMEM f32[2, TR, L]   (z0 plane, z1 plane)
    # out_ref:    VMEM f32[TR, L]
    z0 = z_ref[0]                      # (TR, L)
    z1 = z_ref[1]                      # (TR, L)

    # Folded linear path of leaky_relu doubles as the accumulator init.
    acc = params_ref[40] * z0 + params_ref[41] * z1 + params_ref[42]
    for j in range(_N_HIDDEN):         # statically unrolled, pure VPU
        a = params_ref[j] * z0 + params_ref[10 + j] * z1 + params_ref[20 + j]
        acc = acc + params_ref[30 + j] * jnp.maximum(a, 0.0)

    out_ref[...] = acc.astype(out_ref.dtype)


def _pack_params(fc1_w, fc1_b, fc4_w, fc4_b):
    w10 = fc1_w[:, 0].astype(jnp.float32)
    w11 = fc1_w[:, 1].astype(jnp.float32)
    b1 = fc1_b.astype(jnp.float32)
    w2 = fc4_w[0, :].astype(jnp.float32)
    b2 = fc4_b[0].astype(jnp.float32)
    c0 = jnp.dot(w2, w10)
    c1 = jnp.dot(w2, w11)
    cb = jnp.dot(w2, b1)
    tail = jnp.stack([0.01 * c0, 0.01 * c1, 0.01 * cb + b2])
    return jnp.concatenate([w10, w11, b1, 0.99 * w2, tail])    # (43,)


def _choose_tiling(batch, tile_rows, tile_lanes, min_grid):
    """Pick (L, R, TR): lanes per row, total rows, rows per tile."""
    L = min(tile_lanes, _round_up(batch, 128))   # lane axis, multiple of 128
    R = pl.cdiv(batch, L)                        # rows needed
    if R <= 8:
        # Small/medium batch: one block with TR == R.  A block equal to the
        # full array dim is exempt from the x8 sublane rule, so padding
        # waste stays below L elements.
        TR = R
    else:
        # Large batch: rows rounded to x8, tiled so the grid has at least
        # `min_grid` steps (pipelining everywhere; megacore on v7x).
        R = _round_up(R, 8)
        TR = min(tile_rows, max(8, (R // max(min_grid, 1)) // 8 * 8))
        R = _round_up(R, TR)
    return L, R, TR


def fit_forward_planes(z_planes, fc1_w, fc1_b, fc4_w, fc4_b, *,
                       tile_rows=256, tile_lanes=1024, min_grid=2):
    """Forward pass with z in SoA layout: z_planes (2, B) = [z0; z1].

    Fast entry point: (2, B) -> (2, R, L) is a free row-major reshape (no
    transpose pass over HBM); pad / output slice only happen when B is not
    a multiple of the tile.  Returns (B, 1) float32.
    """
    assert z_planes.ndim == 2 and z_planes.shape[0] == 2
    B = z_planes.shape[1]
    z_planes = z_planes.astype(jnp.float32)
    params = _pack_params(fc1_w, fc1_b, fc4_w, fc4_b)

    L, R, TR = _choose_tiling(B, tile_rows, tile_lanes, min_grid)
    Bp = R * L
    if Bp != B:
        z_planes = jnp.pad(z_planes, ((0, 0), (0, Bp - B)))
    z_t = z_planes.reshape(2, R, L)              # free, row-major view

    out2d = pl.pallas_call(
        _fit_kernel,
        out_shape=jax.ShapeDtypeStruct((R, L), jnp.float32),
        grid=(R // TR,),
        in_specs=[
            # 43 scalars, whole array resident in SMEM across all grid steps.
            pl.BlockSpec(memory_space=pltpu.MemorySpace.SMEM),
            # Streaming z tile: (2, TR, L), batch-tiled along the row axis.
            pl.BlockSpec((2, TR, L), lambda i: (0, i, 0)),
        ],
        out_specs=pl.BlockSpec((TR, L), lambda i: (i, 0)),
        compiler_params=pltpu.CompilerParams(
            dimension_semantics=("parallel",),   # megacore-shardable on v7x
        ),
    )(params, z_t)

    out = out2d.reshape(Bp)
    if Bp != B:
        out = out[:B]
    return out.reshape(B, 1)


def fit_forward(z, fc1_w, fc1_b, fc4_w, fc4_b, **kw):
    """PyTorch-parity interface: z (B, 2) -> (B, 1).

    The z.T here is pure layout plumbing (fuses with z's producer under
    jit); callers holding z0/z1 as separate planes should call
    fit_forward_planes directly and skip it entirely.
    """
    assert z.ndim == 2 and z.shape[1] == 2
    return fit_forward_planes(z.T, fc1_w, fc1_b, fc4_w, fc4_b, **kw)


def fit_forward_ref(z, fc1_w, fc1_b, fc4_w, fc4_b):
    h = z @ fc1_w.T + fc1_b
    h = jnp.where(h >= 0.0, h, 0.01 * h)
    return h @ fc4_w.T + fc4_b


def init_params(key):
    """Deterministic init matching nn.Linear's U(-1/sqrt(fan_in), 1/sqrt(fan_in)),
    stored in PyTorch layout: weight (out, in), bias (out,)."""
    k1, k2, k3, k4 = jax.random.split(key, 4)
    bound1 = 1.0 / jnp.sqrt(2.0)    # fc1 fan_in = 2
    bound2 = 1.0 / jnp.sqrt(10.0)   # fc4 fan_in = 10
    fc1_w = jax.random.uniform(k1, (10, 2), jnp.float32, -bound1, bound1)
    fc1_b = jax.random.uniform(k2, (10,), jnp.float32, -bound1, bound1)
    fc4_w = jax.random.uniform(k3, (1, 10), jnp.float32, -bound2, bound2)
    fc4_b = jax.random.uniform(k4, (1,), jnp.float32, -bound2, bound2)
    return fc1_w, fc1_b, fc4_w, fc4_b


if __name__ == "__main__":
    key = jax.random.PRNGKey(0)
    k_params, k_in = jax.random.split(key)
    fc1_w, fc1_b, fc4_w, fc4_b = init_params(k_params)

    # Batches exercising: single small block, non-multiple-of-128 padding,
    # multi-row full-dim block (TR == R, R not a multiple of 8), and a
    # multi-step grid (pipelined, padded rows sliced off).
    for i, batch in enumerate((8, 300, 2500, 20000)):
        z = jax.random.normal(jax.random.fold_in(k_in, i), (batch, 2),
                              dtype=jnp.float32)

        out = jax.block_until_ready(fit_forward(z, fc1_w, fc1_b, fc4_w, fc4_b))
        ref = fit_forward_ref(z, fc1_w, fc1_b, fc4_w, fc4_b)

        assert out.shape == (batch, 1)
        assert jnp.allclose(out, ref, atol=1e-5, rtol=1e-5), \
            f"mismatch vs JAX reference at batch={batch}"

    print("KERNEL_OK")
</pallas_src>

<mosaic_0001>
module attributes {stable_mosaic.version = 11 : i64} {
  func.func @_fit_kernel(%arg0: i32, %arg1: memref<43xf32, #tpu.memory_space<smem>>, %arg2: memref<2x1x128xf32, #tpu.memory_space<vmem>>, %arg3: memref<1x128xf32, #tpu.memory_space<vmem>>) attributes {dimension_semantics = [#tpu.dimension_semantics<parallel>], iteration_bounds = array<i64: 1>, scalar_prefetch = 0 : i64, scratch_operands = 0 : i64, tpu.core_type = #tpu.core_type<tc>, window_params = [{transform_indices = @transform_0, window_bounds = array<i64: 43>}, {transform_indices = @transform_1, window_bounds = array<i64: 2, 1, 128>}, {transform_indices = @transform_2, window_bounds = array<i64: 1, 128>}]} {
    %c0 = arith.constant 0 : index
    %c0_0 = arith.constant 0 : index
    %c0_1 = arith.constant 0 : index
    %0 = vector.load %arg2[%c0, %c0_0, %c0_1] : memref<2x1x128xf32, #tpu.memory_space<vmem>>, vector<1x1x128xf32>
    %1 = vector.shape_cast %0 : vector<1x1x128xf32> to vector<1x128xf32>
    %c1 = arith.constant 1 : index
    %c0_2 = arith.constant 0 : index
    %c0_3 = arith.constant 0 : index
    %2 = vector.load %arg2[%c1, %c0_2, %c0_3] : memref<2x1x128xf32, #tpu.memory_space<vmem>>, vector<1x1x128xf32>
    %3 = vector.shape_cast %2 : vector<1x1x128xf32> to vector<1x128xf32>
    %c40 = arith.constant 40 : index
    %4 = memref.load %arg1[%c40] : memref<43xf32, #tpu.memory_space<smem>>
    %5 = vector.broadcast %4 : f32 to vector<1x128xf32>
    %6 = arith.mulf %5, %1 : vector<1x128xf32>
    %c41 = arith.constant 41 : index
    %7 = memref.load %arg1[%c41] : memref<43xf32, #tpu.memory_space<smem>>
    %8 = vector.broadcast %7 : f32 to vector<1x128xf32>
    %9 = arith.mulf %8, %3 : vector<1x128xf32>
    %10 = arith.addf %6, %9 : vector<1x128xf32>
    %c42 = arith.constant 42 : index
    %11 = memref.load %arg1[%c42] : memref<43xf32, #tpu.memory_space<smem>>
    %12 = vector.broadcast %11 : f32 to vector<1x128xf32>
    %13 = arith.addf %10, %12 : vector<1x128xf32>
    %c0_4 = arith.constant 0 : index
    %14 = memref.load %arg1[%c0_4] : memref<43xf32, #tpu.memory_space<smem>>
    %15 = vector.broadcast %14 : f32 to vector<1x128xf32>
    %16 = arith.mulf %15, %1 : vector<1x128xf32>
    %c10 = arith.constant 10 : index
    %17 = memref.load %arg1[%c10] : memref<43xf32, #tpu.memory_space<smem>>
    %18 = vector.broadcast %17 : f32 to vector<1x128xf32>
    %19 = arith.mulf %18, %3 : vector<1x128xf32>
    %20 = arith.addf %16, %19 : vector<1x128xf32>
    %c20 = arith.constant 20 : index
    %21 = memref.load %arg1[%c20] : memref<43xf32, #tpu.memory_space<smem>>
    %22 = vector.broadcast %21 : f32 to vector<1x128xf32>
    %23 = arith.addf %20, %22 : vector<1x128xf32>
    %c30 = arith.constant 30 : index
    %24 = memref.load %arg1[%c30] : memref<43xf32, #tpu.memory_space<smem>>
    %cst = arith.constant 0.000000e+00 : f32
    %25 = vector.broadcast %cst : f32 to vector<1x128xf32>
    %26 = arith.maximumf %23, %25 : vector<1x128xf32>
    %27 = vector.broadcast %24 : f32 to vector<1x128xf32>
    %28 = arith.mulf %27, %26 : vector<1x128xf32>
    %29 = arith.addf %13, %28 : vector<1x128xf32>
    %c1_5 = arith.constant 1 : index
    %30 = memref.load %arg1[%c1_5] : memref<43xf32, #tpu.memory_space<smem>>
    %31 = vector.broadcast %30 : f32 to vector<1x128xf32>
    %32 = arith.mulf %31, %1 : vector<1x128xf32>
    %c11 = arith.constant 11 : index
    %33 = memref.load %arg1[%c11] : memref<43xf32, #tpu.memory_space<smem>>
    %34 = vector.broadcast %33 : f32 to vector<1x128xf32>
    %35 = arith.mulf %34, %3 : vector<1x128xf32>
    %36 = arith.addf %32, %35 : vector<1x128xf32>
    %c21 = arith.constant 21 : index
    %37 = memref.load %arg1[%c21] : memref<43xf32, #tpu.memory_space<smem>>
    %38 = vector.broadcast %37 : f32 to vector<1x128xf32>
    %39 = arith.addf %36, %38 : vector<1x128xf32>
    %c31 = arith.constant 31 : index
    %40 = memref.load %arg1[%c31] : memref<43xf32, #tpu.memory_space<smem>>
    %cst_6 = arith.constant 0.000000e+00 : f32
    %41 = vector.broadcast %cst_6 : f32 to vector<1x128xf32>
    %42 = arith.maximumf %39, %41 : vector<1x128xf32>
    %43 = vector.broadcast %40 : f32 to vector<1x128xf32>
    %44 = arith.mulf %43, %42 : vector<1x128xf32>
    %45 = arith.addf %29, %44 : vector<1x128xf32>
    %c2 = arith.constant 2 : index
    %46 = memref.load %arg1[%c2] : memref<43xf32, #tpu.memory_space<smem>>
    %47 = vector.broadcast %46 : f32 to vector<1x128xf32>
    %48 = arith.mulf %47, %1 : vector<1x128xf32>
    %c12 = arith.constant 12 : index
    %49 = memref.load %arg1[%c12] : memref<43xf32, #tpu.memory_space<smem>>
    %50 = vector.broadcast %49 : f32 to vector<1x128xf32>
    %51 = arith.mulf %50, %3 : vector<1x128xf32>
    %52 = arith.addf %48, %51 : vector<1x128xf32>
    %c22 = arith.constant 22 : index
    %53 = memref.load %arg1[%c22] : memref<43xf32, #tpu.memory_space<smem>>
    %54 = vector.broadcast %53 : f32 to vector<1x128xf32>
    %55 = arith.addf %52, %54 : vector<1x128xf32>
    %c32 = arith.constant 32 : index
    %56 = memref.load %arg1[%c32] : memref<43xf32, #tpu.memory_space<smem>>
    %cst_7 = arith.constant 0.000000e+00 : f32
    %57 = vector.broadcast %cst_7 : f32 to vector<1x128xf32>
    %58 = arith.maximumf %55, %57 : vector<1x128xf32>
    %59 = vector.broadcast %56 : f32 to vector<1x128xf32>
    %60 = arith.mulf %59, %58 : vector<1x128xf32>
    %61 = arith.addf %45, %60 : vector<1x128xf32>
    %c3 = arith.constant 3 : index
    %62 = memref.load %arg1[%c3] : memref<43xf32, #tpu.memory_space<smem>>
    %63 = vector.broadcast %62 : f32 to vector<1x128xf32>
    %64 = arith.mulf %63, %1 : vector<1x128xf32>
    %c13 = arith.constant 13 : index
    %65 = memref.load %arg1[%c13] : memref<43xf32, #tpu.memory_space<smem>>
    %66 = vector.broadcast %65 : f32 to vector<1x128xf32>
    %67 = arith.mulf %66, %3 : vector<1x128xf32>
    %68 = arith.addf %64, %67 : vector<1x128xf32>
    %c23 = arith.constant 23 : index
    %69 = memref.load %arg1[%c23] : memref<43xf32, #tpu.memory_space<smem>>
    %70 = vector.broadcast %69 : f32 to vector<1x128xf32>
    %71 = arith.addf %68, %70 : vector<1x128xf32>
    %c33 = arith.constant 33 : index
    %72 = memref.load %arg1[%c33] : memref<43xf32, #tpu.memory_space<smem>>
    %cst_8 = arith.constant 0.000000e+00 : f32
    %73 = vector.broadcast %cst_8 : f32 to vector<1x128xf32>
    %74 = arith.maximumf %71, %73 : vector<1x128xf32>
    %75 = vector.broadcast %72 : f32 to vector<1x128xf32>
    %76 = arith.mulf %75, %74 : vector<1x128xf32>
    %77 = arith.addf %61, %76 : vector<1x128xf32>
    %c4 = arith.constant 4 : index
    %78 = memref.load %arg1[%c4] : memref<43xf32, #tpu.memory_space<smem>>
    %79 = vector.broadcast %78 : f32 to vector<1x128xf32>
    %80 = arith.mulf %79, %1 : vector<1x128xf32>
    %c14 = arith.constant 14 : index
    %81 = memref.load %arg1[%c14] : memref<43xf32, #tpu.memory_space<smem>>
    %82 = vector.broadcast %81 : f32 to vector<1x128xf32>
    %83 = arith.mulf %82, %3 : vector<1x128xf32>
    %84 = arith.addf %80, %83 : vector<1x128xf32>
    %c24 = arith.constant 24 : index
    %85 = memref.load %arg1[%c24] : memref<43xf32, #tpu.memory_space<smem>>
    %86 = vector.broadcast %85 : f32 to vector<1x128xf32>
    %87 = arith.addf %84, %86 : vector<1x128xf32>
    %c34 = arith.constant 34 : index
    %88 = memref.load %arg1[%c34] : memref<43xf32, #tpu.memory_space<smem>>
    %cst_9 = arith.constant 0.000000e+00 : f32
    %89 = vector.broadcast %cst_9 : f32 to vector<1x128xf32>
    %90 = arith.maximumf %87, %89 : vector<1x128xf32>
    %91 = vector.broadcast %88 : f32 to vector<1x128xf32>
    %92 = arith.mulf %91, %90 : vector<1x128xf32>
    %93 = arith.addf %77, %92 : vector<1x128xf32>
    %c5 = arith.constant 5 : index
    %94 = memref.load %arg1[%c5] : memref<43xf32, #tpu.memory_space<smem>>
    %95 = vector.broadcast %94 : f32 to vector<1x128xf32>
    %96 = arith.mulf %95, %1 : vector<1x128xf32>
    %c15 = arith.constant 15 : index
    %97 = memref.load %arg1[%c15] : memref<43xf32, #tpu.memory_space<smem>>
    %98 = vector.broadcast %97 : f32 to vector<1x128xf32>
    %99 = arith.mulf %98, %3 : vector<1x128xf32>
    %100 = arith.addf %96, %99 : vector<1x128xf32>
    %c25 = arith.constant 25 : index
    %101 = memref.load %arg1[%c25] : memref<43xf32, #tpu.memory_space<smem>>
    %102 = vector.broadcast %101 : f32 to vector<1x128xf32>
    %103 = arith.addf %100, %102 : vector<1x128xf32>
    %c35 = arith.constant 35 : index
    %104 = memref.load %arg1[%c35] : memref<43xf32, #tpu.memory_space<smem>>
    %cst_10 = arith.constant 0.000000e+00 : f32
    %105 = vector.broadcast %cst_10 : f32 to vector<1x128xf32>
    %106 = arith.maximumf %103, %105 : vector<1x128xf32>
    %107 = vector.broadcast %104 : f32 to vector<1x128xf32>
    %108 = arith.mulf %107, %106 : vector<1x128xf32>
    %109 = arith.addf %93, %108 : vector<1x128xf32>
    %c6 = arith.constant 6 : index
    %110 = memref.load %arg1[%c6] : memref<43xf32, #tpu.memory_space<smem>>
    %111 = vector.broadcast %110 : f32 to vector<1x128xf32>
    %112 = arith.mulf %111, %1 : vector<1x128xf32>
    %c16 = arith.constant 16 : index
    %113 = memref.load %arg1[%c16] : memref<43xf32, #tpu.memory_space<smem>>
    %114 = vector.broadcast %113 : f32 to vector<1x128xf32>
    %115 = arith.mulf %114, %3 : vector<1x128xf32>
    %116 = arith.addf %112, %115 : vector<1x128xf32>
    %c26 = arith.constant 26 : index
    %117 = memref.load %arg1[%c26] : memref<43xf32, #tpu.memory_space<smem>>
    %118 = vector.broadcast %117 : f32 to vector<1x128xf32>
    %119 = arith.addf %116, %118 : vector<1x128xf32>
    %c36 = arith.constant 36 : index
    %120 = memref.load %arg1[%c36] : memref<43xf32, #tpu.memory_space<smem>>
    %cst_11 = arith.constant 0.000000e+00 : f32
    %121 = vector.broadcast %cst_11 : f32 to vector<1x128xf32>
    %122 = arith.maximumf %119, %121 : vector<1x128xf32>
    %123 = vector.broadcast %120 : f32 to vector<1x128xf32>
    %124 = arith.mulf %123, %122 : vector<1x128xf32>
    %125 = arith.addf %109, %124 : vector<1x128xf32>
    %c7 = arith.constant 7 : index
    %126 = memref.load %arg1[%c7] : memref<43xf32, #tpu.memory_space<smem>>
    %127 = vector.broadcast %126 : f32 to vector<1x128xf32>
    %128 = arith.mulf %127, %1 : vector<1x128xf32>
    %c17 = arith.constant 17 : index
    %129 = memref.load %arg1[%c17] : memref<43xf32, #tpu.memory_space<smem>>
    %130 = vector.broadcast %129 : f32 to vector<1x128xf32>
    %131 = arith.mulf %130, %3 : vector<1x128xf32>
    %132 = arith.addf %128, %131 : vector<1x128xf32>
    %c27 = arith.constant 27 : index
    %133 = memref.load %arg1[%c27] : memref<43xf32, #tpu.memory_space<smem>>
    %134 = vector.broadcast %133 : f32 to vector<1x128xf32>
    %135 = arith.addf %132, %134 : vector<1x128xf32>
    %c37 = arith.constant 37 : index
    %136 = memref.load %arg1[%c37] : memref<43xf32, #tpu.memory_space<smem>>
    %cst_12 = arith.constant 0.000000e+00 : f32
    %137 = vector.broadcast %cst_12 : f32 to vector<1x128xf32>
    %138 = arith.maximumf %135, %137 : vector<1x128xf32>
    %139 = vector.broadcast %136 : f32 to vector<1x128xf32>
    %140 = arith.mulf %139, %138 : vector<1x128xf32>
    %141 = arith.addf %125, %140 : vector<1x128xf32>
    %c8 = arith.constant 8 : index
    %142 = memref.load %arg1[%c8] : memref<43xf32, #tpu.memory_space<smem>>
    %143 = vector.broadcast %142 : f32 to vector<1x128xf32>
    %144 = arith.mulf %143, %1 : vector<1x128xf32>
    %c18 = arith.constant 18 : index
    %145 = memref.load %arg1[%c18] : memref<43xf32, #tpu.memory_space<smem>>
    %146 = vector.broadcast %145 : f32 to vector<1x128xf32>
    %147 = arith.mulf %146, %3 : vector<1x128xf32>
    %148 = arith.addf %144, %147 : vector<1x128xf32>
    %c28 = arith.constant 28 : index
    %149 = memref.load %arg1[%c28] : memref<43xf32, #tpu.memory_space<smem>>
    %150 = vector.broadcast %149 : f32 to vector<1x128xf32>
    %151 = arith.addf %148, %150 : vector<1x128xf32>
    %c38 = arith.constant 38 : index
    %152 = memref.load %arg1[%c38] : memref<43xf32, #tpu.memory_space<smem>>
    %cst_13 = arith.constant 0.000000e+00 : f32
    %153 = vector.broadcast %cst_13 : f32 to vector<1x128xf32>
    %154 = arith.maximumf %151, %153 : vector<1x128xf32>
    %155 = vector.broadcast %152 : f32 to vector<1x128xf32>
    %156 = arith.mulf %155, %154 : vector<1x128xf32>
    %157 = arith.addf %141, %156 : vector<1x128xf32>
    %c9 = arith.constant 9 : index
    %158 = memref.load %arg1[%c9] : memref<43xf32, #tpu.memory_space<smem>>
    %159 = vector.broadcast %158 : f32 to vector<1x128xf32>
    %160 = arith.mulf %159, %1 : vector<1x128xf32>
    %c19 = arith.constant 19 : index
    %161 = memref.load %arg1[%c19] : memref<43xf32, #tpu.memory_space<smem>>
    %162 = vector.broadcast %161 : f32 to vector<1x128xf32>
    %163 = arith.mulf %162, %3 : vector<1x128xf32>
    %164 = arith.addf %160, %163 : vector<1x128xf32>
    %c29 = arith.constant 29 : index
    %165 = memref.load %arg1[%c29] : memref<43xf32, #tpu.memory_space<smem>>
    %166 = vector.broadcast %165 : f32 to vector<1x128xf32>
    %167 = arith.addf %164, %166 : vector<1x128xf32>
    %c39 = arith.constant 39 : index
    %168 = memref.load %arg1[%c39] : memref<43xf32, #tpu.memory_space<smem>>
    %cst_14 = arith.constant 0.000000e+00 : f32
    %169 = vector.broadcast %cst_14 : f32 to vector<1x128xf32>
    %170 = arith.maximumf %167, %169 : vector<1x128xf32>
    %171 = vector.broadcast %168 : f32 to vector<1x128xf32>
    %172 = arith.mulf %171, %170 : vector<1x128xf32>
    %173 = arith.addf %157, %172 : vector<1x128xf32>
    %c0_15 = arith.constant 0 : index
    %c0_16 = arith.constant 0 : index
    %174 = vector.load %arg3[%c0_15, %c0_16] : memref<1x128xf32, #tpu.memory_space<vmem>>, vector<1x128xf32>
    tpu.vector_store %arg3[%c0_15, %c0_16], %173 {strides = array<i32>} : memref<1x128xf32, #tpu.memory_space<vmem>>, vector<1x128xf32>,
    return
  }
  func.func @transform_0(%arg0: i32) -> i32 {
    %c0_i32 = arith.constant 0 : i32
    %c0_i32_0 = arith.constant 0 : i32
    return %c0_i32 : i32
  }
  func.func @transform_1(%arg0: i32) -> (i32, i32, i32) {
    %c0_i32 = arith.constant 0 : i32
    %c0_i32_0 = arith.constant 0 : i32
    %c0_i32_1 = arith.constant 0 : i32
    return %c0_i32, %arg0, %c0_i32_0 : i32, i32, i32
  }
  func.func @transform_2(%arg0: i32) -> (i32, i32) {
    %c0_i32 = arith.constant 0 : i32
    %c0_i32_0 = arith.constant 0 : i32
    return %arg0, %c0_i32 : i32, i32
  }
}

</mosaic_0001>

<llo_original>
// kernel: tpu_custom_call.1
$region0: #{tpu_custom_call.1}
  #allocation0 [shape = 'u32[]', space=smem, size = 0x4, offset = 0x4, fixed_abs, tag = 'smem constant byte address 0x4 - core index']
  #allocation1 [shape = 'u32[144,128]{1,0:T(1,128)}', space=vmem, size = 0x12000, scoped, tag = 'internal scratch']
  %s0 = inlined_call_operand.hbm [shape: f32[43], index: 0, kind: input, shape index: {}]
  %s1 = inlined_call_operand.hbm [shape: f32[2,1,128], index: 1, kind: input, shape index: {}]
  %s2 = inlined_call_operand.hbm [shape: f32[1,128], index: 2, kind: output, shape index: {}]
  %s3 = sld [smem:[#allocation0]]
  $region26: #{tpu_custom_call.1} parent=0
    _
  %s5 = ssub.s32 1, %s3
  %s6 = scalar_select 0, %s5, %s3
  $region1: #{tpu_custom_call.1} parent=0
    #allocation2 [shape = 'u8[512]{0}', space=smem, size = 0x200, scoped, tag = 'input window, operand 0, single buffered']
    #allocation3 [shape = 's32[1]{0}', space=sflag, size = 0x4, scoped, tag = 'scoped memory for tpu_custom_call.1']
    #allocation4 [shape = 's32[1]{0}', space=sflag, size = 0x4, scoped, tag = 'scoped memory for tpu_custom_call.1']
    #allocation5 [shape = 's32[1]{0}', space=sflag, size = 0x4, scoped, tag = 'scoped memory for tpu_custom_call.1']
    #allocation6 [shape = 'u8[1024]{0}', space=vmem, size = 0x400, scoped, tag = 'input window, operand 1, single buffered']
    #allocation7 [shape = 'u8[512]{0}', space=vmem, size = 0x400, scoped, tag = 'output window, operand 0, single buffered']
    %7 = vsyncpa [#allocation5], 0
    %8 = vsyncpa [#allocation3], 0
    %9 = vsyncpa [#allocation4], 0
    // Predicated region
    $region2: #{tpu_custom_call.1} parent=1 // pred_check
      _
    $region3: #{tpu_custom_call.1} parent=1 // pred_check_branch
      %11 = sbr.rel (0) target = $region5
    $region4: #{tpu_custom_call.1} parent=1 // pred_region
      %s13 = ssub.s32 16, 16
      %14 = vsyncadd [#allocation5], %s13
      %17 = dma.hbm_to_smem %s0, 16, [#allocation2], [#allocation5]
    $region5: #{tpu_custom_call.1} parent=1 // pred_fallthru
      _
    // Predicated region
    $region6: #{tpu_custom_call.1} parent=1 // pred_check
      _
    $region7: #{tpu_custom_call.1} parent=1 // pred_check_branch
      %19 = sbr.rel (0) target = $region9
    $region8: #{tpu_custom_call.1} parent=1 // pred_region
      %s21 = ssub.s32 32, 32
      %22 = vsyncadd [#allocation3], %s21
      %s23 = sshll.u32 [#allocation6], 4
      %s24 = int_to_ptr.vmem [resolvable:$true] %s23
      %29 = dma.hbm_to_vmem [thread:$0]  %s1, 32, %s24, [#allocation3], 16, 16, 1
    $region9: #{tpu_custom_call.1} parent=1 // pred_fallthru
      _
    // Predicated region
    $region10: #{tpu_custom_call.1} parent=1 // pred_check
      _
    $region11: #{tpu_custom_call.1} parent=1 // pred_check_branch
      %31 = sbr.rel (0) target = $region13
    $region12: #{tpu_custom_call.1} parent=1 // pred_region
      %32 = dma.done [#allocation5], 16
    $region13: #{tpu_custom_call.1} parent=1 // pred_fallthru
      _
    // Predicated region
    $region14: #{tpu_custom_call.1} parent=1 // pred_check
      _
    $region15: #{tpu_custom_call.1} parent=1 // pred_check_branch
      %34 = sbr.rel (0) target = $region17
    $region16: #{tpu_custom_call.1} parent=1 // pred_region
      %35 = dma.done [#allocation3], 32
    $region17: #{tpu_custom_call.1} parent=1 // pred_fallthru
      _
    %36 = sfence
    %v37 = vld [vmem:[#allocation6] sm:$0x1]
    %s38 = scalar_lea.vmem [#allocation6], 1
    %v39 = vld [vmem:[%s38] sm:$0x1]
    %s40 = sld [smem:[#allocation2 + $0x28]]
    %v41 = vstv %s40
    %v42 = vmul.f32 %v41, %v37
    %s43 = sld [smem:[#allocation2 + $0x29]]
    %v44 = vstv %s43
    %v45 = vmul.f32 %v44, %v39
    %v46 = vadd.f32 %v42, %v45
    %s47 = sld [smem:[#allocation2 + $0x2a]]
    %v48 = vstv %s47
    %v49 = vadd.f32 %v46, %v48
    %s50 = sld [smem:[#allocation2]]
    %v51 = vstv %s50
    %v52 = vmul.f32 %v51, %v37
    %s53 = sld [smem:[#allocation2 + $0xa]]
    %v54 = vstv %s53
    %v55 = vmul.f32 %v54, %v39
    %v56 = vadd.f32 %v52, %v55
    %s57 = sld [smem:[#allocation2 + $0x14]]
    %v58 = vstv %s57
    %v59 = vadd.f32 %v56, %v58
    %s60 = sld [smem:[#allocation2 + $0x1e]]
    %v61 = vmax.f32 %v59, 0.0
    %v62 = vstv %s60
    %v63 = vmul.f32 %v62, %v61
    %v64 = vadd.f32 %v49, %v63
    %s65 = sld [smem:[#allocation2 + $0x1]]
    %v66 = vstv %s65
    %v67 = vmul.f32 %v66, %v37
    %s68 = sld [smem:[#allocation2 + $0xb]]
    %v69 = vstv %s68
    %v70 = vmul.f32 %v69, %v39
    %v71 = vadd.f32 %v67, %v70
    %s72 = sld [smem:[#allocation2 + $0x15]]
    %v73 = vstv %s72
    %v74 = vadd.f32 %v71, %v73
    %s75 = sld [smem:[#allocation2 + $0x1f]]
    %v76 = vmax.f32 %v74, 0.0
    %v77 = vstv %s75
    %v78 = vmul.f32 %v77, %v76
    %v79 = vadd.f32 %v64, %v78
    %s80 = sld [smem:[#allocation2 + $0x2]]
    %v81 = vstv %s80
    %v82 = vmul.f32 %v81, %v37
    %s83 = sld [smem:[#allocation2 + $0xc]]
    %v84 = vstv %s83
    %v85 = vmul.f32 %v84, %v39
    %v86 = vadd.f32 %v82, %v85
    %s87 = sld [smem:[#allocation2 + $0x16]]
    %v88 = vstv %s87
    %v89 = vadd.f32 %v86, %v88
    %s90 = sld [smem:[#allocation2 + $0x20]]
    %v91 = vmax.f32 %v89, 0.0
    %v92 = vstv %s90
    %v93 = vmul.f32 %v92, %v91
    %v94 = vadd.f32 %v79, %v93
    %s95 = sld [smem:[#allocation2 + $0x3]]
    %v96 = vstv %s95
    %v97 = vmul.f32 %v96, %v37
    %s98 = sld [smem:[#allocation2 + $0xd]]
    %v99 = vstv %s98
    %v100 = vmul.f32 %v99, %v39
    %v101 = vadd.f32 %v97, %v100
    %s102 = sld [smem:[#allocation2 + $0x17]]
    %v103 = vstv %s102
    %v104 = vadd.f32 %v101, %v103
    %s105 = sld [smem:[#allocation2 + $0x21]]
    %v106 = vmax.f32 %v104, 0.0
    %v107 = vstv %s105
    %v108 = vmul.f32 %v107, %v106
    %v109 = vadd.f32 %v94, %v108
    %s110 = sld [smem:[#allocation2 + $0x4]]
    %v111 = vstv %s110
    %v112 = vmul.f32 %v111, %v37
    %s113 = sld [smem:[#allocation2 + $0xe]]
    %v114 = vstv %s113
    %v115 = vmul.f32 %v114, %v39
    %v116 = vadd.f32 %v112, %v115
    %s117 = sld [smem:[#allocation2 + $0x18]]
    %v118 = vstv %s117
    %v119 = vadd.f32 %v116, %v118
    %s120 = sld [smem:[#allocation2 + $0x22]]
    %v121 = vmax.f32 %v119, 0.0
    %v122 = vstv %s120
    %v123 = vmul.f32 %v122, %v121
    %v124 = vadd.f32 %v109, %v123
    %s125 = sld [smem:[#allocation2 + $0x5]]
    %v126 = vstv %s125
    %v127 = vmul.f32 %v126, %v37
    %s128 = sld [smem:[#allocation2 + $0xf]]
    %v129 = vstv %s128
    %v130 = vmul.f32 %v129, %v39
    %v131 = vadd.f32 %v127, %v130
    %s132 = sld [smem:[#allocation2 + $0x19]]
    %v133 = vstv %s132
    %v134 = vadd.f32 %v131, %v133
    %s135 = sld [smem:[#allocation2 + $0x23]]
    %v136 = vmax.f32 %v134, 0.0
    %v137 = vstv %s135
    %v138 = vmul.f32 %v137, %v136
    %v139 = vadd.f32 %v124, %v138
    %s140 = sld [smem:[#allocation2 + $0x6]]
    %v141 = vstv %s140
    %v142 = vmul.f32 %v141, %v37
    %s143 = sld [smem:[#allocation2 + $0x10]]
    %v144 = vstv %s143
    %v145 = vmul.f32 %v144, %v39
    %v146 = vadd.f32 %v142, %v145
    %s147 = sld [smem:[#allocation2 + $0x1a]]
    %v148 = vstv %s147
    %v149 = vadd.f32 %v146, %v148
    %s150 = sld [smem:[#allocation2 + $0x24]]
    %v151 = vmax.f32 %v149, 0.0
    %v152 = vstv %s150
    %v153 = vmul.f32 %v152, %v151
    %v154 = vadd.f32 %v139, %v153
    %s155 = sld [smem:[#allocation2 + $0x7]]
    %v156 = vstv %s155
    %v157 = vmul.f32 %v156, %v37
    %s158 = sld [smem:[#allocation2 + $0x11]]
    %v159 = vstv %s158
    %v160 = vmul.f32 %v159, %v39
    %v161 = vadd.f32 %v157, %v160
    %s162 = sld [smem:[#allocation2 + $0x1b]]
    %v163 = vstv %s162
    %v164 = vadd.f32 %v161, %v163
    %s165 = sld [smem:[#allocation2 + $0x25]]
    %v166 = vmax.f32 %v164, 0.0
    %v167 = vstv %s165
    %v168 = vmul.f32 %v167, %v166
    %v169 = vadd.f32 %v154, %v168
    %s170 = sld [smem:[#allocation2 + $0x8]]
    %v171 = vstv %s170
    %v172 = vmul.f32 %v171, %v37
    %s173 = sld [smem:[#allocation2 + $0x12]]
    %v174 = vstv %s173
    %v175 = vmul.f32 %v174, %v39
    %v176 = vadd.f32 %v172, %v175
    %s177 = sld [smem:[#allocation2 + $0x1c]]
    %v178 = vstv %s177
    %v179 = vadd.f32 %v176, %v178
    %s180 = sld [smem:[#allocation2 + $0x26]]
    %v181 = vmax.f32 %v179, 0.0
    %v182 = vstv %s180
    %v183 = vmul.f32 %v182, %v181
    %v184 = vadd.f32 %v169, %v183
    %s185 = sld [smem:[#allocation2 + $0x9]]
    %v186 = vstv %s185
    %v187 = vmul.f32 %v186, %v37
    %s188 = sld [smem:[#allocation2 + $0x13]]
    %v189 = vstv %s188
    %v190 = vmul.f32 %v189, %v39
    %v191 = vadd.f32 %v187, %v190
    %s192 = sld [smem:[#allocation2 + $0x1d]]
    %v193 = vstv %s192
    %v194 = vadd.f32 %v191, %v193
    %s195 = sld [smem:[#allocation2 + $0x27]]
    %v196 = vmax.f32 %v194, 0.0
    %v197 = vstv %s195
    %v198 = vmul.f32 %v197, %v196
    %v199 = vadd.f32 %v184, %v198
    %200 = vst [vmem:[#allocation7] sm:$0x1] %v199
    // Predicated region
    $region18: #{tpu_custom_call.1} parent=1 // pred_check
      _
    $region19: #{tpu_custom_call.1} parent=1 // pred_check_branch
      %202 = sbr.rel (0) target = $region21
    $region20: #{tpu_custom_call.1} parent=1 // pred_region
      %s204 = ssub.s32 16, 16
      %205 = vsyncadd [#allocation4], %s204
      %s207 = sshll.u32 [#allocation7], 4
      %s208 = int_to_ptr.vmem [resolvable:$true] %s207
      %210 = dma.vmem_to_hbm [thread:$0]  %s208, 16, %s2, [#allocation4]
    $region21: #{tpu_custom_call.1} parent=1 // pred_fallthru
      _
    // Predicated region
    $region22: #{tpu_custom_call.1} parent=1 // pred_check
      _
    $region23: #{tpu_custom_call.1} parent=1 // pred_check_branch
      %212 = sbr.rel (0) target = $region25
    $region24: #{tpu_custom_call.1} parent=1 // pred_region
      %213 = dma.done [#allocation4], 16
    $region25: #{tpu_custom_call.1} parent=1 // pred_fallthru
      _
    %214 = vsyncpa [#allocation3], 1
    %215 = vsyncpa [#allocation4], 1
    %216 = vsyncpa [#allocation5], 1

</llo_original>
